<compile_context>
chip_gen: v5e
topology: v5e:2x2
jax: 0.10.0
libtpu: 0.0.40
codegen_flags: <defaults>
</compile_context>

<pallas_src>
import jax
import jax.numpy as jnp
from jax.experimental import pallas as pl
from jax.experimental.pallas import tpu as pltpu

_LANE = 128
_SUBLANE = 8


def _round_up(x, m):
    return ((x + m - 1) // m) * m


def _ppo_critic_kernel(x_ref, w1_ref, b1_ref, w2_ref, b2_ref, w3_ref, b3_ref, q_ref):
    # fc1 + ReLU  (bf16 MXU operands, f32 accumulation; bias/ReLU in f32)
    x = x_ref[...].astype(jnp.bfloat16)                                       # [TB, D]
    h = jnp.dot(x, w1_ref[...], preferred_element_type=jnp.float32)           # [TB, Hp]
    h = jnp.maximum(h + b1_ref[...], 0.0)
    # fc2 + ReLU
    h = jnp.dot(h.astype(jnp.bfloat16), w2_ref[...],
                preferred_element_type=jnp.float32)                           # [TB, Hp]
    h = jnp.maximum(h + b2_ref[...], 0.0)
    # fc3 (out_features == 1): MXU dot_general contracting Hp so the result is
    # lane-dense over the batch dimension. w3 is an (8, Hp) block with only row 0
    # live (sublane-aligned lhs); result is [8, TB], row 0 is q.
    qT = jax.lax.dot_general(w3_ref[...], h.astype(jnp.bfloat16),
                             dimension_numbers=(((1,), (1,)), ((), ())),
                             preferred_element_type=jnp.float32)              # [8, TB]
    q_ref[...] = qT[0:1, :] + b3_ref[...]                                     # [1, TB]


def prepare_params(params):
    """Pad / cast parameters once (hoisted out of the per-forward path).
    Call again only when the parameters change."""
    w1, b1, w2, b2, w3, b3 = params
    D, H = w1.shape
    Hp = _round_up(max(H, _LANE), _LANE)
    f32, bf16 = jnp.float32, jnp.bfloat16

    w1_p = jnp.zeros((D, Hp), bf16).at[:, :H].set(w1.astype(bf16))
    b1_p = jnp.zeros((1, Hp), f32).at[:, :H].set(b1.reshape(1, -1).astype(f32))
    w2_p = jnp.zeros((Hp, Hp), bf16).at[:H, :H].set(w2.astype(bf16))
    b2_p = jnp.zeros((1, Hp), f32).at[:, :H].set(b2.reshape(1, -1).astype(f32))
    # fc3 weight as an 8-row (sublane-aligned) bf16 block; only row 0 is live.
    w3_p = jnp.zeros((_SUBLANE, Hp), bf16).at[0, :H].set(w3.reshape(-1).astype(bf16))
    b3_p = b3.reshape(1, 1).astype(f32)
    return (w1_p, b1_p, w2_p, b2_p, w3_p, b3_p)


def ppo_critic_forward(cent_obs, prepared_params, rnn_states=None, masks=None, *,
                       block_b=2048):
    """Non-recurrent PPOCritic forward. Returns q of shape [B, 1] (float32)."""
    del rnn_states, masks  # unused on the non-recurrent path (matches reference)
    w1_p, b1_p, w2_p, b2_p, w3_p, b3_p = prepared_params
    B, D = cent_obs.shape

    # Batch tile: large (amortizes ~0.35 us/step pipeline overhead), 128-aligned
    # (lane-dense, unmasked output block), and ~B/2 so at least two grid steps
    # exist to feed both v7x TensorCores.
    TB = min(block_b, _round_up(max(-(-B // 2), 1), _LANE))
    # Keep the double-buffered f32 input block under ~16 MiB of VMEM.
    tb_cap = max(_LANE, ((16 * 1024 * 1024) // (2 * 4 * D)) // _LANE * _LANE)
    TB = max(_LANE, min(TB, tb_cap))
    nb = -(-B // TB)

    const = lambda shape: pl.BlockSpec(shape, lambda i: (0, 0))

    q_row = pl.pallas_call(
        _ppo_critic_kernel,
        out_shape=jax.ShapeDtypeStruct((1, B), jnp.float32),
        grid=(nb,),
        in_specs=[
            pl.BlockSpec((TB, D), lambda i: (i, 0)),   # batch-tiled obs (unpadded f32)
            const(w1_p.shape), const(b1_p.shape),      # fc1 weight / bias
            const(w2_p.shape), const(b2_p.shape),      # fc2 weight / bias
            const(w3_p.shape), const(b3_p.shape),      # fc3 weight-block / bias
        ],
        out_specs=pl.BlockSpec((1, TB), lambda i: (0, i)),   # lane-dense over batch
        compiler_params=pltpu.CompilerParams(
            dimension_semantics=("parallel",),         # shard batch grid across TCs (v7x)
            vmem_limit_bytes=48 * 1024 * 1024,         # safe on v7x (64 MiB per TC)
        ),
    )(cent_obs, w1_p, b1_p, w2_p, b2_p, w3_p, b3_p)

    # (1, B) -> (B, 1) is a contiguous reshape (same linear order), not a transpose.
    return q_row.reshape(B, 1)


def make_params(key, obs_dim, hidden_dim):
    """Deterministic parameter init (orthogonal weights, zero bias) mimicking
    the module's `init_` (orthogonal_, constant_(0))."""
    k1, k2, k3 = jax.random.split(key, 3)
    ortho = jax.nn.initializers.orthogonal
    w1 = ortho(scale=jnp.sqrt(2.0))(k1, (obs_dim, hidden_dim), jnp.float32)
    b1 = jnp.zeros((1, hidden_dim), jnp.float32)
    w2 = ortho(scale=jnp.sqrt(2.0))(k2, (hidden_dim, hidden_dim), jnp.float32)
    b2 = jnp.zeros((1, hidden_dim), jnp.float32)
    w3 = ortho(scale=1.0)(k3, (hidden_dim, 1), jnp.float32)
    b3 = jnp.zeros((1, 1), jnp.float32)
    return (w1, b1, w2, b2, w3, b3)


if __name__ == "__main__":
    key = jax.random.PRNGKey(0)
    k_obs, k_par = jax.random.split(key)

    # batch, cent_obs dim, critic_hidden_dim — deliberately non-aligned small shapes
    # to exercise the ragged batch tiling (2 grid steps) and the feature padding.
    B, D, H = 300, 48, 64
    cent_obs = jax.random.normal(k_obs, (B, D), dtype=jnp.float32)
    rnn_states = jnp.zeros((B, 1, H), jnp.float32)  # unused (non-recurrent path)
    masks = jnp.ones((B, 1), jnp.float32)           # unused (non-recurrent path)

    params = make_params(k_par, D, H)
    prepared = prepare_params(params)   # hoisted: refresh only on parameter update

    q = ppo_critic_forward(cent_obs, prepared, rnn_states, masks)
    q = jax.block_until_ready(q)
    assert q.shape == (B, 1) and q.dtype == jnp.float32

    w1, b1, w2, b2, w3, b3 = params

    # Reference with matched precision (bf16 matmul operands, f32 accumulation).
    bf16 = jnp.bfloat16
    h = jnp.maximum(jnp.dot(cent_obs.astype(bf16), w1.astype(bf16),
                            preferred_element_type=jnp.float32) + b1, 0.0)
    h = jnp.maximum(jnp.dot(h.astype(bf16), w2.astype(bf16),
                            preferred_element_type=jnp.float32) + b2, 0.0)
    q_ref = jnp.dot(h.astype(bf16), w3.astype(bf16),
                    preferred_element_type=jnp.float32) + b3
    assert jnp.allclose(q, q_ref, atol=2e-3, rtol=2e-3), float(jnp.max(jnp.abs(q - q_ref)))

    # Loose check against the original pure-f32 math (bf16 operand quantization only).
    h32 = jnp.maximum(cent_obs @ w1 + b1, 0.0)
    h32 = jnp.maximum(h32 @ w2 + b2, 0.0)
    q32 = h32 @ w3 + b3
    assert jnp.allclose(q, q32, atol=1e-1, rtol=1e-1), float(jnp.max(jnp.abs(q - q32)))

    print("KERNEL_OK")
</pallas_src>

<mosaic_0001>
module attributes {stable_mosaic.version = 11 : i64} {
  func.func @_ppo_critic_kernel(%arg0: i32, %arg1: memref<256x48xf32, #tpu.memory_space<vmem>>, %arg2: memref<48x128xbf16, #tpu.memory_space<vmem>>, %arg3: memref<1x128xf32, #tpu.memory_space<vmem>>, %arg4: memref<128x128xbf16, #tpu.memory_space<vmem>>, %arg5: memref<1x128xf32, #tpu.memory_space<vmem>>, %arg6: memref<8x128xbf16, #tpu.memory_space<vmem>>, %arg7: memref<1x1xf32, #tpu.memory_space<vmem>>, %arg8: memref<1x256xf32, #tpu.memory_space<vmem>>) attributes {dimension_semantics = [#tpu.dimension_semantics<parallel>], iteration_bounds = array<i64: 2>, scalar_prefetch = 0 : i64, scratch_operands = 0 : i64, tpu.core_type = #tpu.core_type<tc>, window_params = [{transform_indices = @transform_0, window_bounds = array<i64: 256, 48>}, {pipeline_mode = #tpu.pipeline_mode<synchronous>, transform_indices = @transform_1, window_bounds = array<i64: 48, 128>}, {pipeline_mode = #tpu.pipeline_mode<synchronous>, transform_indices = @transform_2, window_bounds = array<i64: 1, 128>}, {pipeline_mode = #tpu.pipeline_mode<synchronous>, transform_indices = @transform_3, window_bounds = array<i64: 128, 128>}, {pipeline_mode = #tpu.pipeline_mode<synchronous>, transform_indices = @transform_4, window_bounds = array<i64: 1, 128>}, {pipeline_mode = #tpu.pipeline_mode<synchronous>, transform_indices = @transform_5, window_bounds = array<i64: 8, 128>}, {pipeline_mode = #tpu.pipeline_mode<synchronous>, transform_indices = @transform_6, window_bounds = array<i64: 1, 1>}, {transform_indices = @transform_7, window_bounds = array<i64: 1, 256>}]} {
    %c0 = arith.constant 0 : index
    %c0_0 = arith.constant 0 : index
    %0 = vector.load %arg1[%c0, %c0_0] : memref<256x48xf32, #tpu.memory_space<vmem>>, vector<256x48xf32>
    %1 = arith.truncf %0 : vector<256x48xf32> to vector<256x48xbf16>
    %c0_1 = arith.constant 0 : index
    %c0_2 = arith.constant 0 : index
    %2 = vector.load %arg2[%c0_1, %c0_2] : memref<48x128xbf16, #tpu.memory_space<vmem>>, vector<48x128xbf16>
    %cst = arith.constant dense<0.000000e+00> : vector<256x128xf32>
    %3 = tpu.matmul %1, %2, %cst {dimension_numbers = #tpu.dot_dimension_numbers<[1], [0], [0], [1], [0, 0, 1, 1], [], []>} : vector<256x48xbf16>, vector<48x128xbf16>, vector<256x128xf32> -> vector<256x128xf32>
    %c0_3 = arith.constant 0 : index
    %c0_4 = arith.constant 0 : index
    %4 = vector.load %arg3[%c0_3, %c0_4] : memref<1x128xf32, #tpu.memory_space<vmem>>, vector<1x128xf32>
    %5 = vector.broadcast %4 : vector<1x128xf32> to vector<256x128xf32>
    %6 = arith.addf %3, %5 : vector<256x128xf32>
    %cst_5 = arith.constant 0.000000e+00 : f32
    %7 = vector.broadcast %cst_5 : f32 to vector<256x128xf32>
    %8 = arith.maximumf %6, %7 : vector<256x128xf32>
    %9 = arith.truncf %8 : vector<256x128xf32> to vector<256x128xbf16>
    %c0_6 = arith.constant 0 : index
    %c0_7 = arith.constant 0 : index
    %10 = vector.load %arg4[%c0_6, %c0_7] : memref<128x128xbf16, #tpu.memory_space<vmem>>, vector<128x128xbf16>
    %cst_8 = arith.constant dense<0.000000e+00> : vector<256x128xf32>
    %11 = tpu.matmul %9, %10, %cst_8 {dimension_numbers = #tpu.dot_dimension_numbers<[1], [0], [0], [1], [0, 0, 1, 1], [], []>} : vector<256x128xbf16>, vector<128x128xbf16>, vector<256x128xf32> -> vector<256x128xf32>
    %c0_9 = arith.constant 0 : index
    %c0_10 = arith.constant 0 : index
    %12 = vector.load %arg5[%c0_9, %c0_10] : memref<1x128xf32, #tpu.memory_space<vmem>>, vector<1x128xf32>
    %13 = vector.broadcast %12 : vector<1x128xf32> to vector<256x128xf32>
    %14 = arith.addf %11, %13 : vector<256x128xf32>
    %cst_11 = arith.constant 0.000000e+00 : f32
    %15 = vector.broadcast %cst_11 : f32 to vector<256x128xf32>
    %16 = arith.maximumf %14, %15 : vector<256x128xf32>
    %c0_12 = arith.constant 0 : index
    %c0_13 = arith.constant 0 : index
    %17 = vector.load %arg6[%c0_12, %c0_13] : memref<8x128xbf16, #tpu.memory_space<vmem>>, vector<8x128xbf16>
    %18 = arith.truncf %16 : vector<256x128xf32> to vector<256x128xbf16>
    %cst_14 = arith.constant dense<0.000000e+00> : vector<8x256xf32>
    %19 = tpu.matmul %17, %18, %cst_14 {dimension_numbers = #tpu.dot_dimension_numbers<[1], [1], [0], [0], [0, 0, 1, 0], [], []>} : vector<8x128xbf16>, vector<256x128xbf16>, vector<8x256xf32> -> vector<8x256xf32>
    %20 = vector.extract_strided_slice %19 {offsets = [0, 0], sizes = [1, 256], strides = [1, 1]} : vector<8x256xf32> to vector<1x256xf32>
    %c0_15 = arith.constant 0 : index
    %c0_16 = arith.constant 0 : index
    %21 = vector.load %arg7[%c0_15, %c0_16] : memref<1x1xf32, #tpu.memory_space<vmem>>, vector<1x1xf32>
    %22 = vector.broadcast %21 : vector<1x1xf32> to vector<1x256xf32>
    %23 = arith.addf %20, %22 : vector<1x256xf32>
    %c0_17 = arith.constant 0 : index
    %c0_18 = arith.constant 0 : index
    %24 = vector.load %arg8[%c0_17, %c0_18] : memref<1x256xf32, #tpu.memory_space<vmem>>, vector<1x256xf32>
    tpu.vector_store %arg8[%c0_17, %c0_18], %23 {strides = array<i32>} : memref<1x256xf32, #tpu.memory_space<vmem>>, vector<1x256xf32>,
    return
  }
  func.func @transform_0(%arg0: i32) -> (i32, i32) {
    %c0_i32 = arith.constant 0 : i32
    %c0_i32_0 = arith.constant 0 : i32
    return %arg0, %c0_i32 : i32, i32
  }
  func.func @transform_1(%arg0: i32) -> (i32, i32) {
    %c0_i32 = arith.constant 0 : i32
    %c0_i32_0 = arith.constant 0 : i32
    %c0_i32_1 = arith.constant 0 : i32
    return %c0_i32, %c0_i32_0 : i32, i32
  }
  func.func @transform_2(%arg0: i32) -> (i32, i32) {
    %c0_i32 = arith.constant 0 : i32
    %c0_i32_0 = arith.constant 0 : i32
    %c0_i32_1 = arith.constant 0 : i32
    return %c0_i32, %c0_i32_0 : i32, i32
  }
  func.func @transform_3(%arg0: i32) -> (i32, i32) {
    %c0_i32 = arith.constant 0 : i32
    %c0_i32_0 = arith.constant 0 : i32
    %c0_i32_1 = arith.constant 0 : i32
    return %c0_i32, %c0_i32_0 : i32, i32
  }
  func.func @transform_4(%arg0: i32) -> (i32, i32) {
    %c0_i32 = arith.constant 0 : i32
    %c0_i32_0 = arith.constant 0 : i32
    %c0_i32_1 = arith.constant 0 : i32
    return %c0_i32, %c0_i32_0 : i32, i32
  }
  func.func @transform_5(%arg0: i32) -> (i32, i32) {
    %c0_i32 = arith.constant 0 : i32
    %c0_i32_0 = arith.constant 0 : i32
    %c0_i32_1 = arith.constant 0 : i32
    return %c0_i32, %c0_i32_0 : i32, i32
  }
  func.func @transform_6(%arg0: i32) -> (i32, i32) {
    %c0_i32 = arith.constant 0 : i32
    %c0_i32_0 = arith.constant 0 : i32
    %c0_i32_1 = arith.constant 0 : i32
    return %c0_i32, %c0_i32_0 : i32, i32
  }
  func.func @transform_7(%arg0: i32) -> (i32, i32) {
    %c0_i32 = arith.constant 0 : i32
    %c0_i32_0 = arith.constant 0 : i32
    return %c0_i32, %arg0 : i32, i32
  }
}

</mosaic_0001>

<llo_original>
// kernel: tpu_custom_call.1
$region0: #{tpu_custom_call.1}
  #allocation0 [shape = 'u32[]', space=smem, size = 0x4, offset = 0x4, fixed_abs, tag = 'smem constant byte address 0x4 - core index']
  #allocation1 [shape = 'u32[72,128]{1,0:T(1,128)}', space=vmem, size = 0x9000, scoped, tag = 'internal scratch']
  #allocation2 [shape = 'f32[1,1]{1,0:T(1,128)S(1)}', space=vmem, size = 0x200, scoped, tag = 'scoped memory for tpu_custom_call.1']
  %s0 = inlined_call_operand.vmem [shape: f32[300,48], index: 0, kind: input, shape index: {}]
  %s1 = inlined_call_operand.vmem [shape: bf16[48,128], index: 1, kind: input, shape index: {}]
  %s2 = inlined_call_operand.vmem [shape: f32[1,128], index: 2, kind: input, shape index: {}]
  %s3 = inlined_call_operand.vmem [shape: bf16[128,128], index: 3, kind: input, shape index: {}]
  %s4 = inlined_call_operand.vmem [shape: f32[1,128], index: 4, kind: input, shape index: {}]
  %s5 = inlined_call_operand.vmem [shape: bf16[8,128], index: 5, kind: input, shape index: {}]
  %s6 = inlined_call_operand.<no memory space> [shape: f32[1,1], index: 6, kind: input, shape index: {}]
  %s7 = inlined_call_operand.hbm [shape: f32[1,300], index: 7, kind: output, shape index: {}]
  %s8 = sld [smem:[#allocation0]]
  $region61: #{tpu_custom_call.1} parent=0
    _
  %s10 = ssub.s32 1, %s8
  %s11 = scalar_select 0, %s10, %s8
  %v12 = vstv %s6
  %13 = vst [vmem:[#allocation2] sm:$0x1] %v12
  $region1: #{tpu_custom_call.1} parent=0
    #allocation3 [shape = 'u8[2048]{0}', space=vmem, size = 0x800, scoped, tag = 'output window, operand 0']
    #allocation4 [shape = 's32[2]{0}', space=sflag, size = 0x8, scoped, tag = 'scoped memory for tpu_custom_call.1']
    %14 = vsyncpa [#allocation4], 0
    %s15 = scalar_lea.sflag [#allocation4], 1
    %16 = vsyncpa %s15, 0
    loop: start=0, step=1, limit=4
    $region2: #{tpu_custom_call.1} parent=1 // loop_pre_header
      _
    $region3: #{tpu_custom_call.1} parent=1 // loop_header
      %s18 = sphi 0, %s22
      %p19 = scmp.ge.s32.totalorder %s18, 4
      %s28 = sphi 0, %s30
      %s31 = sphi 0, %s28
      %s32 = sphi 0, %s31
      %s48 = sphi 0, %s32
      %s52 = sphi 0, %s52
      %s54 = sphi 0, %s52
      %s55 = sphi 0, %s54
      %s69 = sphi 0, %s55
      %s73 = sphi 0, %s73
      %s75 = sphi 0, %s73
      %s76 = sphi 0, %s75
      %s90 = sphi 0, %s76
      %s94 = sphi 0, %s94
      %s96 = sphi 0, %s94
      %s97 = sphi 0, %s96
      %s111 = sphi 0, %s97
      %s115 = sphi 0, %s115
      %s117 = sphi 0, %s115
      %s118 = sphi 0, %s117
      %s132 = sphi 0, %s118
      %s136 = sphi 0, %s136
      %s138 = sphi 0, %s136
      %s139 = sphi 0, %s138
      %s153 = sphi 0, %s139
      %s157 = sphi 0, %s157
      %s159 = sphi 0, %s157
      %s160 = sphi 0, %s159
      %s174 = sphi 0, %s160
      %s180 = sphi 0, %s182
      %s183 = sphi 0, %s180
      %s184 = sphi 0, %s183
      %s200 = sphi 0, %s184
    $region4: #{tpu_custom_call.1} parent=1 // loop_header_branch
      %21 = sbr.rel (%p19) target = $region8
    $region5: #{tpu_custom_call.1} parent=1 // loop_body
      %s23 = ssub.s32 %s18, 1
      %s24 = ssub.s32 %s18, 2
      %s25 = sadd.s32 %s18, 1
      %s26 = ssub.s32 %s18, %s25
      %p27 = scmp.eq.s32.totalorder %s26, 0
      %s29 = sadd.s32 %s28, 1
      %s30 = scalar_select %p27, %s28, %s29
      %p33 = pneg %p27
      %p34 = scmp.eq.s32.totalorder %s18, 1
      %p35 = por %p33, %p34
      %p36 = scmp.ne.s32.totalorder %s28, %s31
      %p37 = scmp.eq.s32.totalorder %s18, 0
      %p38 = por %p36, %p37
      %p39 = scmp.ne.s32.totalorder %s28, %s31
      %p40 = scmp.eq.s32.totalorder %s23, 1
      %p41 = por %p39, %p40
      %p42 = scmp.ne.s32.totalorder %s31, %s32
      %p43 = scmp.eq.s32.totalorder %s23, 0
      %p44 = por %p42, %p43
      %p45 = scmp.ne.s32.totalorder %s31, %s32
      %p46 = scmp.eq.s32.totalorder %s24, 1
      %p47 = por %p45, %p46
      %p49 = scmp.ne.s32.totalorder %s32, %s48
      %p50 = scmp.eq.s32.totalorder %s24, 0
      %p51 = por %p49, %p50
      %s53 = sadd.s32 %s52, 1
      %p56 = scmp.eq.s32.totalorder %s18, 1
      %p57 = scmp.ne.s32.totalorder %s52, %s54
      %p58 = scmp.eq.s32.totalorder %s18, 0
      %p59 = por %p57, %p58
      %p60 = scmp.ne.s32.totalorder %s52, %s54
      %p61 = scmp.eq.s32.totalorder %s23, 1
      %p62 = por %p60, %p61
      %p63 = scmp.ne.s32.totalorder %s54, %s55
      %p64 = scmp.eq.s32.totalorder %s23, 0
      %p65 = por %p63, %p64
      %p66 = scmp.ne.s32.totalorder %s54, %s55
      %p67 = scmp.eq.s32.totalorder %s24, 1
      %p68 = por %p66, %p67
      %p70 = scmp.ne.s32.totalorder %s55, %s69
      %p71 = scmp.eq.s32.totalorder %s24, 0
      %p72 = por %p70, %p71
      %s74 = sadd.s32 %s73, 1
      %p77 = scmp.eq.s32.totalorder %s18, 1
      %p78 = scmp.ne.s32.totalorder %s73, %s75
      %p79 = scmp.eq.s32.totalorder %s18, 0
      %p80 = por %p78, %p79
      %p81 = scmp.ne.s32.totalorder %s73, %s75
      %p82 = scmp.eq.s32.totalorder %s23, 1
      %p83 = por %p81, %p82
      %p84 = scmp.ne.s32.totalorder %s75, %s76
      %p85 = scmp.eq.s32.totalorder %s23, 0
      %p86 = por %p84, %p85
      %p87 = scmp.ne.s32.totalorder %s75, %s76
      %p88 = scmp.eq.s32.totalorder %s24, 1
      %p89 = por %p87, %p88
      %p91 = scmp.ne.s32.totalorder %s76, %s90
      %p92 = scmp.eq.s32.totalorder %s24, 0
      %p93 = por %p91, %p92
      %s95 = sadd.s32 %s94, 1
      %p98 = scmp.eq.s32.totalorder %s18, 1
      %p99 = scmp.ne.s32.totalorder %s94, %s96
      %p100 = scmp.eq.s32.totalorder %s18, 0
      %p101 = por %p99, %p100
      %p102 = scmp.ne.s32.totalorder %s94, %s96
      %p103 = scmp.eq.s32.totalorder %s23, 1
      %p104 = por %p102, %p103
      %p105 = scmp.ne.s32.totalorder %s96, %s97
      %p106 = scmp.eq.s32.totalorder %s23, 0
      %p107 = por %p105, %p106
      %p108 = scmp.ne.s32.totalorder %s96, %s97
      %p109 = scmp.eq.s32.totalorder %s24, 1
      %p110 = por %p108, %p109
      %p112 = scmp.ne.s32.totalorder %s97, %s111
      %p113 = scmp.eq.s32.totalorder %s24, 0
      %p114 = por %p112, %p113
      %s116 = sadd.s32 %s115, 1
      %p119 = scmp.eq.s32.totalorder %s18, 1
      %p120 = scmp.ne.s32.totalorder %s115, %s117
      %p121 = scmp.eq.s32.totalorder %s18, 0
      %p122 = por %p120, %p121
      %p123 = scmp.ne.s32.totalorder %s115, %s117
      %p124 = scmp.eq.s32.totalorder %s23, 1
      %p125 = por %p123, %p124
      %p126 = scmp.ne.s32.totalorder %s117, %s118
      %p127 = scmp.eq.s32.totalorder %s23, 0
      %p128 = por %p126, %p127
      %p129 = scmp.ne.s32.totalorder %s117, %s118
      %p130 = scmp.eq.s32.totalorder %s24, 1
      %p131 = por %p129, %p130
      %p133 = scmp.ne.s32.totalorder %s118, %s132
      %p134 = scmp.eq.s32.totalorder %s24, 0
      %p135 = por %p133, %p134
      %s137 = sadd.s32 %s136, 1
      %p140 = scmp.eq.s32.totalorder %s18, 1
      %p141 = scmp.ne.s32.totalorder %s136, %s138
      %p142 = scmp.eq.s32.totalorder %s18, 0
      %p143 = por %p141, %p142
      %p144 = scmp.ne.s32.totalorder %s136, %s138
      %p145 = scmp.eq.s32.totalorder %s23, 1
      %p146 = por %p144, %p145
      %p147 = scmp.ne.s32.totalorder %s138, %s139
      %p148 = scmp.eq.s32.totalorder %s23, 0
      %p149 = por %p147, %p148
      %p150 = scmp.ne.s32.totalorder %s138, %s139
      %p151 = scmp.eq.s32.totalorder %s24, 1
      %p152 = por %p150, %p151
      %p154 = scmp.ne.s32.totalorder %s139, %s153
      %p155 = scmp.eq.s32.totalorder %s24, 0
      %p156 = por %p154, %p155
      %s158 = sadd.s32 %s157, 1
      %p161 = scmp.eq.s32.totalorder %s18, 1
      %p162 = scmp.ne.s32.totalorder %s157, %s159
      %p163 = scmp.eq.s32.totalorder %s18, 0
      %p164 = por %p162, %p163
      %p165 = scmp.ne.s32.totalorder %s157, %s159
      %p166 = scmp.eq.s32.totalorder %s23, 1
      %p167 = por %p165, %p166
      %p168 = scmp.ne.s32.totalorder %s159, %s160
      %p169 = scmp.eq.s32.totalorder %s23, 0
      %p170 = por %p168, %p169
      %p171 = scmp.ne.s32.totalorder %s159, %s160
      %p172 = scmp.eq.s32.totalorder %s24, 1
      %p173 = por %p171, %p172
      %p175 = scmp.ne.s32.totalorder %s160, %s174
      %p176 = scmp.eq.s32.totalorder %s24, 0
      %p177 = por %p175, %p176
      %s178 = ssub.s32 %s18, %s25
      %p179 = scmp.eq.s32.totalorder %s178, 0
      %s181 = sadd.s32 %s180, 1
      %s182 = scalar_select %p179, %s180, %s181
      %p185 = pneg %p179
      %p186 = scmp.eq.s32.totalorder %s18, 1
      %p187 = por %p185, %p186
      %p188 = scmp.ne.s32.totalorder %s180, %s183
      %p189 = scmp.eq.s32.totalorder %s18, 0
      %p190 = por %p188, %p189
      %p191 = scmp.ne.s32.totalorder %s180, %s183
      %p192 = scmp.eq.s32.totalorder %s23, 1
      %p193 = por %p191, %p192
      %p194 = scmp.ne.s32.totalorder %s183, %s184
      %p195 = scmp.eq.s32.totalorder %s23, 0
      %p196 = por %p194, %p195
      %p197 = scmp.ne.s32.totalorder %s183, %s184
      %p198 = scmp.eq.s32.totalorder %s24, 1
      %p199 = por %p197, %p198
      %p201 = scmp.ne.s32.totalorder %s184, %s200
      %p202 = scmp.eq.s32.totalorder %s24, 0
      %p203 = por %p201, %p202
      %p204 = scmp.le.s32.totalorder 1, %s18
      %p205 = scmp.lt.s32.totalorder %s18, 3
      %p206 = pnand %p204, %p205
      %p207 = pneg %p206
      // Predicated region
      $region9: #{tpu_custom_call.1} parent=5 // pred_check
        _
      $region10: #{tpu_custom_call.1} parent=5 // pred_check_branch
        %209 = sbr.rel (%p206) target = $region12
      $region11: #{tpu_custom_call.1} parent=5 // pred_region
        %s210 = ssub.s32 %s18, 1
        // Predicated region
        $region13: #{tpu_custom_call.1} parent=11 // pred_check
          %p211 = pneg %p65
        $region14: #{tpu_custom_call.1} parent=11 // pred_check_branch
          %213 = sbr.rel (%p211) target = $region16
        $region15: #{tpu_custom_call.1} parent=11 // pred_region
          _
        $region16: #{tpu_custom_call.1} parent=11 // pred_fallthru
          _
        // Predicated region
        $region17: #{tpu_custom_call.1} parent=11 // pred_check
          %p214 = pneg %p86
        $region18: #{tpu_custom_call.1} parent=11 // pred_check_branch
          %216 = sbr.rel (%p214) target = $region20
        $region19: #{tpu_custom_call.1} parent=11 // pred_region
          _
        $region20: #{tpu_custom_call.1} parent=11 // pred_fallthru
          _
        // Predicated region
        $region21: #{tpu_custom_call.1} parent=11 // pred_check
          %p217 = pneg %p107
        $region22: #{tpu_custom_call.1} parent=11 // pred_check_branch
          %219 = sbr.rel (%p217) target = $region24
        $region23: #{tpu_custom_call.1} parent=11 // pred_region
          _
        $region24: #{tpu_custom_call.1} parent=11 // pred_fallthru
          _
        // Predicated region
        $region25: #{tpu_custom_call.1} parent=11 // pred_check
          %p220 = pneg %p128
        $region26: #{tpu_custom_call.1} parent=11 // pred_check_branch
          %222 = sbr.rel (%p220) target = $region28
        $region27: #{tpu_custom_call.1} parent=11 // pred_region
          _
        $region28: #{tpu_custom_call.1} parent=11 // pred_fallthru
          _
        // Predicated region
        $region29: #{tpu_custom_call.1} parent=11 // pred_check
          %p223 = pneg %p149
        $region30: #{tpu_custom_call.1} parent=11 // pred_check_branch
          %225 = sbr.rel (%p223) target = $region32
        $region31: #{tpu_custom_call.1} parent=11 // pred_region
          _
        $region32: #{tpu_custom_call.1} parent=11 // pred_fallthru
          _
        // Predicated region
        $region33: #{tpu_custom_call.1} parent=11 // pred_check
          %p226 = pneg %p170
        $region34: #{tpu_custom_call.1} parent=11 // pred_check_branch
          %228 = sbr.rel (%p226) target = $region36
        $region35: #{tpu_custom_call.1} parent=11 // pred_region
          _
        $region36: #{tpu_custom_call.1} parent=11 // pred_fallthru
          _
      $region12: #{tpu_custom_call.1} parent=5 // pred_fallthru
        _
      %p229 = scmp.lt.s32.totalorder %s18, 2
      // Predicated region
      $region37: #{tpu_custom_call.1} parent=5 // pred_check
        %p230 = pneg %p229
      $region38: #{tpu_custom_call.1} parent=5 // pred_check_branch
        %232 = sbr.rel (%p230) target = $region40
      $region39: #{tpu_custom_call.1} parent=5 // pred_region
        // Predicated region
        $region41: #{tpu_custom_call.1} parent=39 // pred_check
          %p233 = pneg %p38
        $region42: #{tpu_custom_call.1} parent=39 // pred_check_branch
          %235 = sbr.rel (%p233) target = $region44
        $region43: #{tpu_custom_call.1} parent=39 // pred_region
          %s236 = smul.u32 32, %s18
          %s237 = ssub.s32 38, %s236
          %p238 = scmp.lt.s32.totalorder %s237, 32
          %s239 = scalar_select %p238, %s237, 32
          %s240 = smul.u32 8, %s239
          %p241 = scmp.lt.s32.totalorder %s236, 37
          %s242 = scalar_select %p241, %s236, 37
          %s243 = smul.addr %s242, 8
          %s244 = scalar_lea.vmem %s0, %s243
          %s245 = smul.u32 32, %s18
          %s246 = ssub.s32 38, %s245
          %p247 = scmp.lt.s32.totalorder %s246, 32
          %s248 = scalar_select %p247, %s246, 32
          %s249 = smul.u32 8, %s248
        $region44: #{tpu_custom_call.1} parent=39 // pred_fallthru
          _
      $region40: #{tpu_custom_call.1} parent=5 // pred_fallthru
        _
      %p250 = scmp.le.s32.totalorder 1, %s18
      %p251 = scmp.lt.s32.totalorder %s18, 3
      %p252 = pnand %p250, %p251
      %p253 = pneg %p252
      // Predicated region
      $region45: #{tpu_custom_call.1} parent=5 // pred_check
        _
      $region46: #{tpu_custom_call.1} parent=5 // pred_check_branch
        %255 = sbr.rel (%p252) target = $region48
      $region47: #{tpu_custom_call.1} parent=5 // pred_region
        %s256 = ssub.s32 %s18, 1
        %s257 = smul.u32 32, %s23
        %s258 = ssub.s32 38, %s257
        %p259 = scmp.lt.s32.totalorder %s258, 32
        %s260 = scalar_select %p259, %s258, 32
        %s261 = smul.u32 8, %s260
        %p262 = scmp.lt.s32.totalorder %s257, 37
        %s263 = scalar_select %p262, %s257, 37
        %s264 = smul.addr %s263, 8
        %s265 = scalar_lea.vmem %s0, %s264
        %p266 = pneg %p44
        %p267 = pneg %p41
        %p268 = pneg %p65
        %p269 = pneg %p62
        %p270 = pneg %p86
        %p271 = pneg %p83
        %p272 = pneg %p107
        %p273 = pneg %p104
        %p274 = pneg %p128
        %p275 = pneg %p125
        %p276 = pneg %p149
        %p277 = pneg %p146
        %p278 = pneg %p170
        %p279 = pneg %p167
        %p280 = pneg %p196
        %p281 = pneg %p193
        %s282 = sand.u32 %s183, 1
        %s283 = scalar_lea.sflag [#allocation4], %s282
        %s284 = sand.u32 %s183, 1
        %s285 = smul.addr %s284, 2
        %s286 = scalar_lea.vmem [#allocation3], %s285
        %s287 = smul.u32 32, %s23
        %s288 = ssub.s32 38, %s287
        %p289 = scmp.lt.s32.totalorder %s288, 32
        %s290 = scalar_select %p289, %s288, 32
        %s291 = smul.u32 8, %s290
        %p292 = scmp.lt.s32.totalorder %s287, 37
        %s293 = scalar_select %p292, %s287, 37
        %s294 = smul.addr %s293, 8
        %s295 = scalar_lea.vmem %s0, %s294
        %s296 = smul.u32 32, %s23
        %s297 = ssub.s32 38, %s296
        %p298 = scmp.lt.s32.totalorder %s297, 32
        %s299 = scalar_select %p298, %s297, 32
        %s300 = smul.u32 8, %s299
        %s301 = smul.u32 2, %s23
        %s302 = ssub.s32 3, %s301
        %p303 = scmp.lt.s32.totalorder %s302, 2
        %s304 = scalar_select %p303, %s302, 2
        %v306 = vld [vmem:[%s295] sm:$0xff]
        %v307 = vld [vmem:[%s295 + $0x8] sm:$0xff]
        %v308 = vld [vmem:[%s295 + $0x10] sm:$0xff]
        %v309 = vld [vmem:[%s295 + $0x18] sm:$0xff]
        %v310 = vld [vmem:[%s295 + $0x20] sm:$0xff]
        %v311 = vld [vmem:[%s295 + $0x28] sm:$0xff]
        %v312 = vld [vmem:[%s295 + $0x30] sm:$0xff]
        %v313 = vld [vmem:[%s295 + $0x38] sm:$0xff]
        %v314 = vld [vmem:[%s295 + $0x40] sm:$0xff]
        %v315 = vld [vmem:[%s295 + $0x48] sm:$0xff]
        %v316 = vld [vmem:[%s295 + $0x50] sm:$0xff]
        %v317 = vld [vmem:[%s295 + $0x58] sm:$0xff]
        %v318 = vld [vmem:[%s295 + $0x60] sm:$0xff]
        %v319 = vld [vmem:[%s295 + $0x68] sm:$0xff]
        %v320 = vld [vmem:[%s295 + $0x70] sm:$0xff]
        %v321 = vld [vmem:[%s295 + $0x78] sm:$0xff]
        %v322 = vld [vmem:[%s295 + $0x80] sm:$0xff]
        %v323 = vld [vmem:[%s295 + $0x88] sm:$0xff]
        %v324 = vld [vmem:[%s295 + $0x90] sm:$0xff]
        %v325 = vld [vmem:[%s295 + $0x98] sm:$0xff]
        %v326 = vld [vmem:[%s295 + $0xa0] sm:$0xff]
        %v327 = vld [vmem:[%s295 + $0xa8] sm:$0xff]
        %v328 = vld [vmem:[%s295 + $0xb0] sm:$0xff]
        %v329 = vld [vmem:[%s295 + $0xb8] sm:$0xff]
        %v330 = vld [vmem:[%s295 + $0xc0] sm:$0xff]
        %v331 = vld [vmem:[%s295 + $0xc8] sm:$0xff]
        %v332 = vld [vmem:[%s295 + $0xd0] sm:$0xff]
        %v333 = vld [vmem:[%s295 + $0xd8] sm:$0xff]
        %v334 = vld [vmem:[%s295 + $0xe0] sm:$0xff]
        %v335 = vld [vmem:[%s295 + $0xe8] sm:$0xff]
        %v336 = vld [vmem:[%s295 + $0xf0] sm:$0xff]
        %v337 = vld [vmem:[%s295 + $0xf8] sm:$0xff]
        %v338 = vpack.c.bf16 %v307, %v306
        %v339 = vpack.c.bf16 %v309, %v308
        %v340 = vpack.c.bf16 %v311, %v310
        %v341 = vpack.c.bf16 %v313, %v312
        %v342 = vpack.c.bf16 %v315, %v314
        %v343 = vpack.c.bf16 %v317, %v316
        %v344 = vpack.c.bf16 %v319, %v318
        %v345 = vpack.c.bf16 %v321, %v320
        %v346 = vpack.c.bf16 %v323, %v322
        %v347 = vpack.c.bf16 %v325, %v324
        %v348 = vpack.c.bf16 %v327, %v326
        %v349 = vpack.c.bf16 %v329, %v328
        %v350 = vpack.c.bf16 %v331, %v330
        %v351 = vpack.c.bf16 %v333, %v332
        %v352 = vpack.c.bf16 %v335, %v334
        %v353 = vpack.c.bf16 %v337, %v336
        %v354 = vld [vmem:[%s1] sm:$0xf]
        %v355 = vld [vmem:[%s1 + $0x4] sm:$0xf]
        %v356 = vld [vmem:[%s1 + $0x8] sm:$0xf]
        %v357 = vld [vmem:[%s1 + $0xc] sm:$0xf]
        %v358 = vld [vmem:[%s1 + $0x10] sm:$0xf]
        %v359 = vld [vmem:[%s1 + $0x14] sm:$0xf]
        %v360 = vld [vmem:[%s2] sm:$0x1]
        %v362 = vperm.slane %v360, 0
        %v370 = vunpack.c.l.b16 %v354
        %v371 = vunpack.c.l.b16 %v355
        %v372 = vunpack.c.l.b16 %v356
        %v373 = vunpack.c.l.b16 %v357
        %v374 = vunpack.c.l.b16 %v358
        %v375 = vunpack.c.l.b16 %v359
        %v376 = vpack.c.b16 %v371, %v370
        %v377 = vpack.c.b16 %v373, %v372
        %v378 = vpack.c.b16 %v375, %v374
        %vm382 = vcmask 392192
        %v384 = vsel %vm382, %v338, 0
        %v387 = vsel %vm382, %v339, 0
        %v390 = vsel %vm382, %v340, 0
        %v393 = vsel %vm382, %v341, 0
        %v396 = vsel %vm382, %v342, 0
        %v399 = vsel %vm382, %v343, 0
        %v402 = vsel %vm382, %v344, 0
        %v405 = vsel %vm382, %v345, 0
        %v408 = vsel %vm382, %v346, 0
        %v411 = vsel %vm382, %v347, 0
        %v414 = vsel %vm382, %v348, 0
        %v417 = vsel %vm382, %v349, 0
        %v420 = vsel %vm382, %v350, 0
        %v423 = vsel %vm382, %v351, 0
        %v426 = vsel %vm382, %v352, 0
        %v429 = vsel %vm382, %v353, 0
        %431 = vmatpush.bf16.msra.mxu0 0
        %432 = vmatpush.bf16.msra.mxu0 0
        %433 = vmatpush.bf16.msra.mxu0 0
        %434 = vmatpush.bf16.msra.mxu0 0
        %435 = vmatpush.bf16.msra.mxu0 0
        %436 = vmatpush.bf16.msra.mxu0 %v378
        %437 = vmatpush.bf16.msra.mxu0 %v377
        %438 = vmatpush.bf16.msra.mxu0 %v376
        %439 = vmatmul.bf16.gmra.mxu0 %v384
        %v440 = vpop.f32.mrf.mxu0
        %v441 = vadd.f32 %v362, %v440
        %v442 = vpop.f32.mrf.mxu0
        %v443 = vadd.f32 %v362, %v442
        %444 = vmatmul.bf16.gmra.mxu0 %v387
        %v445 = vpop.f32.mrf.mxu0
        %v446 = vadd.f32 %v362, %v445
        %v447 = vpop.f32.mrf.mxu0
        %v448 = vadd.f32 %v362, %v447
        %449 = vmatmul.bf16.gmra.mxu0 %v390
        %v450 = vpop.f32.mrf.mxu0
        %v451 = vadd.f32 %v362, %v450
        %v452 = vpop.f32.mrf.mxu0
        %v453 = vadd.f32 %v362, %v452
        %454 = vmatmul.bf16.gmra.mxu0 %v393
        %v455 = vpop.f32.mrf.mxu0
        %v456 = vadd.f32 %v362, %v455
        %v457 = vpop.f32.mrf.mxu0
        %v458 = vadd.f32 %v362, %v457
        %459 = vmatmul.bf16.gmra.mxu0 %v396
        %v460 = vpop.f32.mrf.mxu0
        %v461 = vadd.f32 %v362, %v460
        %v462 = vpop.f32.mrf.mxu0
        %v463 = vadd.f32 %v362, %v462
        %464 = vmatmul.bf16.gmra.mxu0 %v399
        %v465 = vpop.f32.mrf.mxu0
        %v466 = vadd.f32 %v362, %v465
        %v467 = vpop.f32.mrf.mxu0
        %v468 = vadd.f32 %v362, %v467
        %469 = vmatmul.bf16.gmra.mxu0 %v402
        %v470 = vpop.f32.mrf.mxu0
        %v471 = vadd.f32 %v362, %v470
        %v472 = vpop.f32.mrf.mxu0
        %v473 = vadd.f32 %v362, %v472
        %474 = vmatmul.bf16.gmra.mxu0 %v405
        %v475 = vpop.f32.mrf.mxu0
        %v476 = vadd.f32 %v362, %v475
        %v477 = vpop.f32.mrf.mxu0
        %v478 = vadd.f32 %v362, %v477
        %479 = vmatmul.bf16.gmra.mxu0 %v408
        %v480 = vpop.f32.mrf.mxu0
        %v481 = vadd.f32 %v362, %v480
        %v482 = vpop.f32.mrf.mxu0
        %v483 = vadd.f32 %v362, %v482
        %484 = vmatmul.bf16.gmra.mxu0 %v411
        %v485 = vpop.f32.mrf.mxu0
        %v486 = vadd.f32 %v362, %v485
        %v487 = vpop.f32.mrf.mxu0
        %v488 = vadd.f32 %v362, %v487
        %489 = vmatmul.bf16.gmra.mxu0 %v414
        %v490 = vpop.f32.mrf.mxu0
        %v491 = vadd.f32 %v362, %v490
        %v492 = vpop.f32.mrf.mxu0
        %v493 = vadd.f32 %v362, %v492
        %494 = vmatmul.bf16.gmra.mxu0 %v417
        %v495 = vpop.f32.mrf.mxu0
        %v496 = vadd.f32 %v362, %v495
        %v497 = vpop.f32.mrf.mxu0
        %v498 = vadd.f32 %v362, %v497
        %499 = vmatmul.bf16.gmra.mxu0 %v420
        %v500 = vpop.f32.mrf.mxu0
        %v501 = vadd.f32 %v362, %v500
        %v502 = vpop.f32.mrf.mxu0
        %v503 = vadd.f32 %v362, %v502
        %504 = vmatmul.bf16.gmra.mxu0 %v423
        %v505 = vpop.f32.mrf.mxu0
        %v506 = vadd.f32 %v362, %v505
        %v507 = vpop.f32.mrf.mxu0
        %v508 = vadd.f32 %v362, %v507
        %509 = vmatmul.bf16.gmra.mxu0 %v426
        %v510 = vpop.f32.mrf.mxu0
        %v511 = vadd.f32 %v362, %v510
        %v512 = vpop.f32.mrf.mxu0
        %v513 = vadd.f32 %v362, %v512
        %514 = vmatmul.bf16.gmra.mxu0 %v429
        %v515 = vpop.f32.mrf.mxu0
        %v516 = vadd.f32 %v362, %v515
        %v517 = vpop.f32.mrf.mxu0
        %v518 = vadd.f32 %v362, %v517
        %519 = vdwg.mxu0
        %v520 = vmax.f32 %v441, 0.0
        %v521 = vmax.f32 %v443, 0.0
        %v522 = vmax.f32 %v446, 0.0
        %v523 = vmax.f32 %v448, 0.0
        %v524 = vmax.f32 %v451, 0.0
        %v525 = vmax.f32 %v453, 0.0
        %v526 = vmax.f32 %v456, 0.0
        %v527 = vmax.f32 %v458, 0.0
        %v528 = vmax.f32 %v461, 0.0
        %v529 = vmax.f32 %v463, 0.0
        %v530 = vmax.f32 %v466, 0.0
        %v531 = vmax.f32 %v468, 0.0
        %v532 = vmax.f32 %v471, 0.0
        %v533 = vmax.f32 %v473, 0.0
        %v534 = vmax.f32 %v476, 0.0
        %v535 = vmax.f32 %v478, 0.0
        %v536 = vmax.f32 %v481, 0.0
        %v537 = vmax.f32 %v483, 0.0
        %v538 = vmax.f32 %v486, 0.0
        %v539 = vmax.f32 %v488, 0.0
        %v540 = vmax.f32 %v491, 0.0
        %v541 = vmax.f32 %v493, 0.0
        %v542 = vmax.f32 %v496, 0.0
        %v543 = vmax.f32 %v498, 0.0
        %v544 = vmax.f32 %v501, 0.0
        %v545 = vmax.f32 %v503, 0.0
        %v546 = vmax.f32 %v506, 0.0
        %v547 = vmax.f32 %v508, 0.0
        %v548 = vmax.f32 %v511, 0.0
        %v549 = vmax.f32 %v513, 0.0
        %v550 = vmax.f32 %v516, 0.0
        %v551 = vmax.f32 %v518, 0.0
        %v552 = vpack.c.bf16 %v521, %v520
        %v553 = vpack.c.bf16 %v523, %v522
        %v554 = vpack.c.bf16 %v525, %v524
        %v555 = vpack.c.bf16 %v527, %v526
        %v556 = vpack.c.bf16 %v529, %v528
        %v557 = vpack.c.bf16 %v531, %v530
        %v558 = vpack.c.bf16 %v533, %v532
        %v559 = vpack.c.bf16 %v535, %v534
        %v560 = vpack.c.bf16 %v537, %v536
        %v561 = vpack.c.bf16 %v539, %v538
        %v562 = vpack.c.bf16 %v541, %v540
        %v563 = vpack.c.bf16 %v543, %v542
        %v564 = vpack.c.bf16 %v545, %v544
        %v565 = vpack.c.bf16 %v547, %v546
        %v566 = vpack.c.bf16 %v549, %v548
        %v567 = vpack.c.bf16 %v551, %v550
        %v568 = vld [vmem:[%s3] sm:$0xf]
        %v569 = vld [vmem:[%s3 + $0x4] sm:$0xf]
        %v570 = vld [vmem:[%s3 + $0x8] sm:$0xf]
        %v571 = vld [vmem:[%s3 + $0xc] sm:$0xf]
        %v572 = vld [vmem:[%s3 + $0x10] sm:$0xf]
        %v573 = vld [vmem:[%s3 + $0x14] sm:$0xf]
        %v574 = vld [vmem:[%s3 + $0x18] sm:$0xf]
        %v575 = vld [vmem:[%s3 + $0x1c] sm:$0xf]
        %v576 = vld [vmem:[%s3 + $0x20] sm:$0xf]
        %v577 = vld [vmem:[%s3 + $0x24] sm:$0xf]
        %v578 = vld [vmem:[%s3 + $0x28] sm:$0xf]
        %v579 = vld [vmem:[%s3 + $0x2c] sm:$0xf]
        %v580 = vld [vmem:[%s3 + $0x30] sm:$0xf]
        %v581 = vld [vmem:[%s3 + $0x34] sm:$0xf]
        %v582 = vld [vmem:[%s3 + $0x38] sm:$0xf]
        %v583 = vld [vmem:[%s3 + $0x3c] sm:$0xf]
        %v584 = vld [vmem:[%s4] sm:$0x1]
        %v586 = vperm.slane %v584, 0
        %v604 = vunpack.c.l.b16 %v568
        %v605 = vunpack.c.l.b16 %v569
        %v606 = vunpack.c.l.b16 %v570
        %v607 = vunpack.c.l.b16 %v571
        %v608 = vunpack.c.l.b16 %v572
        %v609 = vunpack.c.l.b16 %v573
        %v610 = vunpack.c.l.b16 %v574
        %v611 = vunpack.c.l.b16 %v575
        %v612 = vunpack.c.l.b16 %v576
        %v613 = vunpack.c.l.b16 %v577
        %v614 = vunpack.c.l.b16 %v578
        %v615 = vunpack.c.l.b16 %v579
        %v616 = vunpack.c.l.b16 %v580
        %v617 = vunpack.c.l.b16 %v581
        %v618 = vunpack.c.l.b16 %v582
        %v619 = vunpack.c.l.b16 %v583
        %v620 = vpack.c.b16 %v605, %v604
        %v621 = vpack.c.b16 %v607, %v606
        %v622 = vpack.c.b16 %v609, %v608
        %v623 = vpack.c.b16 %v611, %v610
        %v624 = vpack.c.b16 %v613, %v612
        %v625 = vpack.c.b16 %v615, %v614
        %v626 = vpack.c.b16 %v617, %v616
        %v627 = vpack.c.b16 %v619, %v618
        %636 = vmatpush.bf16.msra.mxu0 %v627
        %637 = vmatpush.bf16.msra.mxu0 %v626
        %638 = vmatpush.bf16.msra.mxu0 %v625
        %639 = vmatpush.bf16.msra.mxu0 %v624
        %640 = vmatpush.bf16.msra.mxu0 %v623
        %641 = vmatpush.bf16.msra.mxu0 %v622
        %642 = vmatpush.bf16.msra.mxu0 %v621
        %643 = vmatpush.bf16.msra.mxu0 %v620
        %644 = vmatmul.bf16.gmra.mxu0 %v552
        %v645 = vpop.f32.mrf.mxu0
        %v646 = vadd.f32 %v586, %v645
        %v647 = vpop.f32.mrf.mxu0
        %v648 = vadd.f32 %v586, %v647
        %649 = vmatmul.bf16.gmra.mxu0 %v553
        %v650 = vpop.f32.mrf.mxu0
        %v651 = vadd.f32 %v586, %v650
        %v652 = vpop.f32.mrf.mxu0
        %v653 = vadd.f32 %v586, %v652
        %654 = vmatmul.bf16.gmra.mxu0 %v554
        %v655 = vpop.f32.mrf.mxu0
        %v656 = vadd.f32 %v586, %v655
        %v657 = vpop.f32.mrf.mxu0
        %v658 = vadd.f32 %v586, %v657
        %659 = vmatmul.bf16.gmra.mxu0 %v555
        %v660 = vpop.f32.mrf.mxu0
        %v661 = vadd.f32 %v586, %v660
        %v662 = vpop.f32.mrf.mxu0
        %v663 = vadd.f32 %v586, %v662
        %664 = vmatmul.bf16.gmra.mxu0 %v556
        %v665 = vpop.f32.mrf.mxu0
        %v666 = vadd.f32 %v586, %v665
        %v667 = vpop.f32.mrf.mxu0
        %v668 = vadd.f32 %v586, %v667
        %669 = vmatmul.bf16.gmra.mxu0 %v557
        %v670 = vpop.f32.mrf.mxu0
        %v671 = vadd.f32 %v586, %v670
        %v672 = vpop.f32.mrf.mxu0
        %v673 = vadd.f32 %v586, %v672
        %674 = vmatmul.bf16.gmra.mxu0 %v558
        %v675 = vpop.f32.mrf.mxu0
        %v676 = vadd.f32 %v586, %v675
        %v677 = vpop.f32.mrf.mxu0
        %v678 = vadd.f32 %v586, %v677
        %679 = vmatmul.bf16.gmra.mxu0 %v559
        %v680 = vpop.f32.mrf.mxu0
        %v681 = vadd.f32 %v586, %v680
        %v682 = vpop.f32.mrf.mxu0
        %v683 = vadd.f32 %v586, %v682
        %684 = vmatmul.bf16.gmra.mxu0 %v560
        %v685 = vpop.f32.mrf.mxu0
        %v686 = vadd.f32 %v586, %v685
        %v687 = vpop.f32.mrf.mxu0
        %v688 = vadd.f32 %v586, %v687
        %689 = vmatmul.bf16.gmra.mxu0 %v561
        %v690 = vpop.f32.mrf.mxu0
        %v691 = vadd.f32 %v586, %v690
        %v692 = vpop.f32.mrf.mxu0
        %v693 = vadd.f32 %v586, %v692
        %694 = vmatmul.bf16.gmra.mxu0 %v562
        %v695 = vpop.f32.mrf.mxu0
        %v696 = vadd.f32 %v586, %v695
        %v697 = vpop.f32.mrf.mxu0
        %v698 = vadd.f32 %v586, %v697
        %699 = vmatmul.bf16.gmra.mxu0 %v563
        %v700 = vpop.f32.mrf.mxu0
        %v701 = vadd.f32 %v586, %v700
        %v702 = vpop.f32.mrf.mxu0
        %v703 = vadd.f32 %v586, %v702
        %704 = vmatmul.bf16.gmra.mxu0 %v564
        %v705 = vpop.f32.mrf.mxu0
        %v706 = vadd.f32 %v586, %v705
        %v707 = vpop.f32.mrf.mxu0
        %v708 = vadd.f32 %v586, %v707
        %709 = vmatmul.bf16.gmra.mxu0 %v565
        %v710 = vpop.f32.mrf.mxu0
        %v711 = vadd.f32 %v586, %v710
        %v712 = vpop.f32.mrf.mxu0
        %v713 = vadd.f32 %v586, %v712
        %714 = vmatmul.bf16.gmra.mxu0 %v566
        %v715 = vpop.f32.mrf.mxu0
        %v716 = vadd.f32 %v586, %v715
        %v717 = vpop.f32.mrf.mxu0
        %v718 = vadd.f32 %v586, %v717
        %719 = vmatmul.bf16.gmra.mxu0 %v567
        %v720 = vpop.f32.mrf.mxu0
        %v721 = vadd.f32 %v586, %v720
        %v722 = vpop.f32.mrf.mxu0
        %v723 = vadd.f32 %v586, %v722
        %724 = vdwg.mxu0
        %v725 = vmax.f32 %v646, 0.0
        %v726 = vmax.f32 %v648, 0.0
        %v727 = vmax.f32 %v651, 0.0
        %v728 = vmax.f32 %v653, 0.0
        %v729 = vmax.f32 %v656, 0.0
        %v730 = vmax.f32 %v658, 0.0
        %v731 = vmax.f32 %v661, 0.0
        %v732 = vmax.f32 %v663, 0.0
        %v733 = vmax.f32 %v666, 0.0
        %v734 = vmax.f32 %v668, 0.0
        %v735 = vmax.f32 %v671, 0.0
        %v736 = vmax.f32 %v673, 0.0
        %v737 = vmax.f32 %v676, 0.0
        %v738 = vmax.f32 %v678, 0.0
        %v739 = vmax.f32 %v681, 0.0
        %v740 = vmax.f32 %v683, 0.0
        %v741 = vmax.f32 %v686, 0.0
        %v742 = vmax.f32 %v688, 0.0
        %v743 = vmax.f32 %v691, 0.0
        %v744 = vmax.f32 %v693, 0.0
        %v745 = vmax.f32 %v696, 0.0
        %v746 = vmax.f32 %v698, 0.0
        %v747 = vmax.f32 %v701, 0.0
        %v748 = vmax.f32 %v703, 0.0
        %v749 = vmax.f32 %v706, 0.0
        %v750 = vmax.f32 %v708, 0.0
        %v751 = vmax.f32 %v711, 0.0
        %v752 = vmax.f32 %v713, 0.0
        %v753 = vmax.f32 %v716, 0.0
        %v754 = vmax.f32 %v718, 0.0
        %v755 = vmax.f32 %v721, 0.0
        %v756 = vmax.f32 %v723, 0.0
        %v757 = vld [vmem:[%s5] sm:$0xf]
        %v758 = vpack.c.bf16 %v726, %v725
        %v759 = vpack.c.bf16 %v728, %v727
        %v760 = vpack.c.bf16 %v730, %v729
        %v761 = vpack.c.bf16 %v732, %v731
        %v762 = vpack.c.bf16 %v734, %v733
        %v763 = vpack.c.bf16 %v736, %v735
        %v764 = vpack.c.bf16 %v738, %v737
        %v765 = vpack.c.bf16 %v740, %v739
        %v766 = vpack.c.bf16 %v742, %v741
        %v767 = vpack.c.bf16 %v744, %v743
        %v768 = vpack.c.bf16 %v746, %v745
        %v769 = vpack.c.bf16 %v748, %v747
        %v770 = vpack.c.bf16 %v750, %v749
        %v771 = vpack.c.bf16 %v752, %v751
        %v772 = vpack.c.bf16 %v754, %v753
        %v773 = vpack.c.bf16 %v756, %v755
        %774 = vmatpush.bf16.xpose.msra.mxu0 %v765
        %775 = vmatpush.bf16.xpose.msra.mxu0 %v764
        %776 = vmatpush.bf16.xpose.msra.mxu0 %v763
        %777 = vmatpush.bf16.xpose.msra.mxu0 %v762
        %778 = vmatpush.bf16.xpose.msra.mxu0 %v761
        %779 = vmatpush.bf16.xpose.msra.mxu0 %v760
        %780 = vmatpush.bf16.xpose.msra.mxu0 %v759
        %781 = vmatpush.bf16.xpose.msra.mxu0 %v758
        %782 = vmatmul.bf16.gmra.mxu0 %v757
        %v783 = vpop.f32.mrf.mxu0
        %v784 = vadd.f32 0.0, %v783
        %v785 = vpop.f32.mrf.mxu0
        %786 = vdwg.mxu0
        %787 = vmatpush.bf16.xpose.msra.mxu0 %v773
        %788 = vmatpush.bf16.xpose.msra.mxu0 %v772
        %789 = vmatpush.bf16.xpose.msra.mxu0 %v771
        %790 = vmatpush.bf16.xpose.msra.mxu0 %v770
        %791 = vmatpush.bf16.xpose.msra.mxu0 %v769
        %792 = vmatpush.bf16.xpose.msra.mxu0 %v768
        %793 = vmatpush.bf16.xpose.msra.mxu0 %v767
        %794 = vmatpush.bf16.xpose.msra.mxu0 %v766
        %795 = vmatmul.bf16.gmra.mxu0 %v757
        %v796 = vpop.f32.mrf.mxu0
        %v797 = vadd.f32 0.0, %v796
        %v798 = vpop.f32.mrf.mxu0
        %799 = vdwg.mxu0
        %v800 = vld [vmem:[#allocation2] sm:$0x1]
        %802 = vset.pattern.permute.xlu0 0
        %803 = vperm.xlu0 %802, %v800
        %v804 = vpop.permute.xlu0 %803
        %v806 = vperm.slane %v804, 0
        %v807 = vadd.f32 %v784, %v806
        %v808 = vadd.f32 %v797, %v806
        %v811 = vrot.slane %v808, 7
        %vm812 = vcmask 1040384
        %v813 = vsel %vm812, %v807, %v811
        %v815 = vlaneseq
        %vm816 = vcmp.ge.s32.totalorder %v815, 0
        %vm817 = vcmp.lt.s32.totalorder %v815, 256
        %vm818 = vmand %vm816, %vm817
        %819 = vst.msk [vmem:[%s286] sm:$0x3] %vm818, %v813
        %s820 = sand.u32 %s183, 1
        %s821 = scalar_lea.sflag [#allocation4], %s820
        %s822 = sand.u32 %s183, 1
        %s823 = smul.addr %s822, 2
        %s824 = scalar_lea.vmem [#allocation3], %s823
        // Predicated region
        $region49: #{tpu_custom_call.1} parent=47 // pred_check
          %p825 = pneg %p193
        $region50: #{tpu_custom_call.1} parent=47 // pred_check_branch
          %827 = sbr.rel (%p825) target = $region52
        $region51: #{tpu_custom_call.1} parent=47 // pred_region
          %s828 = smul.u32 2, %s23
          %s829 = ssub.s32 3, %s828
          %p830 = scmp.lt.s32.totalorder %s829, 2
          %s831 = scalar_select %p830, %s829, 2
          %s832 = ssub.s32 2, %s831
          %s833 = sshll.u32 %s832, 4
          %834 = vsyncadd %s821, %s833
          %p835 = scmp.ne.s32.totalorder 0, %s831
          %s836 = scalar_lea.hbm %s7, %s828
          %s837 = sshll.u32 %s831, 4
          %s838 = sshll.u32 %s824, 4
          %s839 = int_to_ptr.vmem [resolvable:$true] %s838
          %s840 = sshll.u32 %s836, 4
          %s841 = int_to_ptr.hbm [resolvable:$true] %s840
          %843 = dma.vmem_to_hbm [thread:$0]  (%p835), %s839, %s837, %s841, %s821
        $region52: #{tpu_custom_call.1} parent=47 // pred_fallthru
          _
      $region48: #{tpu_custom_call.1} parent=5 // pred_fallthru
        _
      %p844 = scmp.le.s32.totalorder 2, %s18
      // Predicated region
      $region53: #{tpu_custom_call.1} parent=5 // pred_check
        %p845 = pneg %p844
      $region54: #{tpu_custom_call.1} parent=5 // pred_check_branch
        %847 = sbr.rel (%p845) target = $region56
      $region55: #{tpu_custom_call.1} parent=5 // pred_region
        %s848 = ssub.s32 %s18, 2
        // Predicated region
        $region57: #{tpu_custom_call.1} parent=55 // pred_check
          %p849 = pneg %p199
        $region58: #{tpu_custom_call.1} parent=55 // pred_check_branch
          %851 = sbr.rel (%p849) target = $region60
        $region59: #{tpu_custom_call.1} parent=55 // pred_region
          %s852 = sand.u32 %s184, 1
          %s853 = scalar_lea.sflag [#allocation4], %s852
          %s854 = sand.u32 %s184, 1
          %s855 = smul.addr %s854, 2
          %s856 = scalar_lea.vmem [#allocation3], %s855
          %858 = dma.done %s853, 32
        $region60: #{tpu_custom_call.1} parent=55 // pred_fallthru
          _
      $region56: #{tpu_custom_call.1} parent=5 // pred_fallthru
        _
    $region6: #{tpu_custom_call.1} parent=1 // loop_footer
      %s22 = sadd.s32 1, %s18
    $region7: #{tpu_custom_call.1} parent=1 // loop_footer_branch
      %17 = sbr.rel target = $region3
    $region8: #{tpu_custom_call.1} parent=1 // loop_exit
      _
    %859 = vsyncpa [#allocation4], 1
    %s860 = scalar_lea.sflag [#allocation4], 1
    %861 = vsyncpa %s860, 1

</llo_original>
